<compile_context>
chip_gen: v7x
topology: tpu7x:2x2x1
jax: 0.10.0
libtpu: 0.0.40
codegen_flags: <defaults>
</compile_context>

<pallas_src>
import math

import jax
import jax.numpy as jnp
from jax.experimental import pallas as pl
from jax.experimental.pallas import tpu as pltpu

MAX_PERIOD = 10000.0


def timestep_embedder_kernel(args_ref, w1_ref, b1_ref, w2_ref, b2_ref, o_ref):
    # args_ref: (tile_n, half) f32        -- t[:,None] * freqs[None], lane-dense
    # w1_ref:   (2*half, hidden) bf16     -- [w1_cos; w1_sin], constant block
    # b1_ref:   (1, hidden) f32           -- constant block
    # w2_ref:   (hidden, tile_h) bf16     -- column tile of w2
    # b2_ref:   (1, tile_h) f32           -- column tile of b2
    # o_ref:    (tile_n, tile_h)
    half = args_ref.shape[1]

    args = args_ref[...]                                   # (tile_n, half) f32
    cos_e = jnp.cos(args).astype(jnp.bfloat16)
    sin_e = jnp.sin(args).astype(jnp.bfloat16)

    # Static, tile-aligned views of the packed slab (zero-cost).
    w1_cos = w1_ref[0:half, :]                             # (half, hidden) bf16
    w1_sin = w1_ref[half:2 * half, :]                      # (half, hidden) bf16

    # Linear 1 (concat-free: two K=half MXU pushes) + bias, f32 accumulation.
    h = (jnp.dot(cos_e, w1_cos, preferred_element_type=jnp.float32)
         + jnp.dot(sin_e, w1_sin, preferred_element_type=jnp.float32)
         + b1_ref[...])

    # SiLU: x * sigmoid(x) = x / (1 + exp(-x)); approx reciprocal stays on the
    # (otherwise free) EUP slot instead of a f32 VPU divide.
    h = h * pl.reciprocal(1.0 + jnp.exp(-h), approx=True)

    # Linear 2 on this hidden-out tile, bf16 operands / f32 accumulation.
    out = (jnp.dot(h.astype(jnp.bfloat16), w2_ref[...],
                   preferred_element_type=jnp.float32)
           + b2_ref[...])
    o_ref[...] = out.astype(o_ref.dtype)


def pack_timestep_embedder_params(w1, b1, w2, b2):
    """Pack / cast parameters once at init time (off the per-call hot path).

    w1: (freq_dim, hidden), w2: (hidden, hidden), biases (hidden,).
    """
    freq_dim, hidden = w1.shape
    half = freq_dim // 2
    # Odd freq_dim: the zero-pad embedding column multiplies w1's last row and
    # contributes nothing, so drop that row.
    return {
        "w1": jnp.asarray(w1[:2 * half, :], jnp.bfloat16),   # [w1_cos; w1_sin]
        "b1": jnp.asarray(b1, jnp.float32).reshape(1, hidden),
        "w2": jnp.asarray(w2, jnp.bfloat16),                 # (hidden, hidden)
        "b2": jnp.asarray(b2, jnp.float32).reshape(1, hidden),
    }


def _pick_hidden_tile(hidden, block_h):
    """Largest multiple of 128 dividing `hidden` and <= block_h, else hidden."""
    if hidden % 128 == 0:
        t = min(block_h, hidden)
        t -= t % 128
        while t >= 128:
            if hidden % t == 0:
                return t
            t -= 128
    return hidden


def timestep_embedder(t, params, *, max_period=MAX_PERIOD, block_n=256,
                      block_h=512, out_dtype=jnp.float32):
    """t: (N,) float; params from pack_timestep_embedder_params().

    Returns (N, hidden) embeddings matching the PyTorch module forward.
    """
    w1_slab, b1_row = params["w1"], params["b1"]
    w2_bf16, b2_row = params["w2"], params["b2"]
    two_half, hidden = w1_slab.shape
    half = two_half // 2
    n = t.shape[0]

    # Lane-dense sinusoidal args built outside the kernel (hoists the freq exp
    # table off the in-kernel EUP and avoids a lane-width-1 (N, 1) block).
    freqs = jnp.exp(-math.log(max_period)
                    * jnp.arange(half, dtype=jnp.float32) / half)    # (half,)
    args = t.astype(jnp.float32)[:, None] * freqs[None, :]           # (n, half)

    # Row tile: multiple of 8; N padded up to a multiple of tile_n so a large
    # non-multiple batch never collapses into one giant block.
    n8 = -(-n // 8) * 8
    tile_n = min(block_n, n8)
    n_pad = -(-n // tile_n) * tile_n
    if n_pad != n:
        args = jnp.pad(args, ((0, n_pad - n), (0, 0)))

    tile_h = _pick_hidden_tile(hidden, block_h)
    # Hidden-out axis is the OUTER grid axis, rows inner: each w2 column tile
    # is DMA'd once; only the (cheap) args stream is re-read per hidden tile.
    grid = (hidden // tile_h, n_pad // tile_n)

    # Scoped-VMEM budget from the actual block sizes (constants single-
    # buffered, streamed blocks double-buffered) + headroom for intermediates.
    out_bytes = jnp.dtype(out_dtype).itemsize
    vmem_est = (2 * tile_n * half * 4            # args  (double, f32)
                + 1 * two_half * hidden * 2      # w1    (single, bf16)
                + 1 * hidden * 4                 # b1    (single, f32)
                + 2 * hidden * tile_h * 2        # w2    (double, bf16)
                + 2 * tile_h * 4                 # b2    (double, f32)
                + 2 * tile_n * tile_h * out_bytes
                + tile_n * hidden * 4)           # in-kernel h intermediate
    vmem_limit = int(min(128 * 1024 * 1024,
                         max(2 * vmem_est, 16 * 1024 * 1024)))

    out = pl.pallas_call(
        timestep_embedder_kernel,
        out_shape=jax.ShapeDtypeStruct((n_pad, hidden), out_dtype),
        grid_spec=pltpu.PrefetchScalarGridSpec(
            num_scalar_prefetch=0,
            grid=grid,
            in_specs=[
                pl.BlockSpec((tile_n, half), lambda j, i: (i, 0)),
                pl.BlockSpec((two_half, hidden), lambda j, i: (0, 0),
                             pipeline_mode=pl.Buffered(1)),
                pl.BlockSpec((1, hidden), lambda j, i: (0, 0),
                             pipeline_mode=pl.Buffered(1)),
                pl.BlockSpec((hidden, tile_h), lambda j, i: (0, j)),
                pl.BlockSpec((1, tile_h), lambda j, i: (0, j)),
            ],
            out_specs=pl.BlockSpec((tile_n, tile_h), lambda j, i: (i, j)),
        ),
        compiler_params=pltpu.CompilerParams(
            dimension_semantics=("parallel", "parallel"),
            vmem_limit_bytes=vmem_limit),
    )(args, w1_slab, b1_row, w2_bf16, b2_row)
    return out[:n]


def timestep_embedder_ref(t, w1, b1, w2, b2, *, max_period=MAX_PERIOD):
    """Pure-JAX f32 reference mirroring the PyTorch module."""
    freq_dim = w1.shape[0]
    half = freq_dim // 2
    freqs = jnp.exp(-math.log(max_period)
                    * jnp.arange(half, dtype=jnp.float32) / half)
    args = t.astype(jnp.float32)[:, None] * freqs[None]
    emb = jnp.concatenate([jnp.cos(args), jnp.sin(args)], axis=-1)
    if freq_dim % 2:
        emb = jnp.concatenate([emb, jnp.zeros_like(emb[:, :1])], axis=-1)
    h = emb @ w1 + b1
    h = h * jax.nn.sigmoid(h)
    return h @ w2 + b2


def _check(key, n, freq, hidden, **kw):
    k_t, k_w1, k_b1, k_w2, k_b2 = jax.random.split(key, 5)
    t = jax.random.uniform(k_t, (n,), jnp.float32, minval=0.0, maxval=1000.0)
    w1 = jax.random.normal(k_w1, (freq, hidden), jnp.float32) * 0.02
    b1 = jax.random.normal(k_b1, (hidden,), jnp.float32) * 0.02
    w2 = jax.random.normal(k_w2, (hidden, hidden), jnp.float32) * 0.02
    b2 = jax.random.normal(k_b2, (hidden,), jnp.float32) * 0.02

    params = pack_timestep_embedder_params(w1, b1, w2, b2)   # once, at "init"
    out = jax.block_until_ready(timestep_embedder(t, params, **kw))
    ref = jax.block_until_ready(timestep_embedder_ref(t, w1, b1, w2, b2))

    assert out.shape == (n, hidden)
    # bf16 MXU operands + approx reciprocal, f32 accumulation -> loose tol.
    assert jnp.allclose(out, ref, atol=2e-2, rtol=2e-2), float(
        jnp.max(jnp.abs(out - ref)))


if __name__ == "__main__":
    key = jax.random.PRNGKey(0)
    k0, k1 = jax.random.split(key)

    # Module-default small demo: N=8, frequency_embedding_size=256, hidden=128.
    _check(k0, n=8, freq=256, hidden=128)
    # Exercise multi-tile grid paths (hidden-out tiling + row tiling + padding).
    _check(k1, n=20, freq=64, hidden=256, block_n=8, block_h=128)

    print("KERNEL_OK")
</pallas_src>

<mosaic_0001>
module attributes {stable_mosaic.version = 11 : i64} {
  func.func @timestep_embedder_kernel(%arg0: i32, %arg1: i32, %arg2: memref<8x128xf32, #tpu.memory_space<vmem>>, %arg3: memref<256x128xbf16, #tpu.memory_space<vmem>>, %arg4: memref<1x128xf32, #tpu.memory_space<vmem>>, %arg5: memref<128x128xbf16, #tpu.memory_space<vmem>>, %arg6: memref<1x128xf32, #tpu.memory_space<vmem>>, %arg7: memref<8x128xf32, #tpu.memory_space<vmem>>) attributes {dimension_semantics = [#tpu.dimension_semantics<parallel>, #tpu.dimension_semantics<parallel>], iteration_bounds = array<i64: 1, 1>, scalar_prefetch = 0 : i64, scratch_operands = 0 : i64, tpu.core_type = #tpu.core_type<tc>, window_params = [{transform_indices = @transform_0, window_bounds = array<i64: 8, 128>}, {pipeline_mode = #tpu.pipeline_mode<synchronous>, transform_indices = @transform_1, window_bounds = array<i64: 256, 128>}, {pipeline_mode = #tpu.pipeline_mode<synchronous>, transform_indices = @transform_2, window_bounds = array<i64: 1, 128>}, {transform_indices = @transform_3, window_bounds = array<i64: 128, 128>}, {transform_indices = @transform_4, window_bounds = array<i64: 1, 128>}, {transform_indices = @transform_5, window_bounds = array<i64: 8, 128>}]} {
    %c0 = arith.constant 0 : index
    %c0_0 = arith.constant 0 : index
    %0 = vector.load %arg2[%c0, %c0_0] : memref<8x128xf32, #tpu.memory_space<vmem>>, vector<8x128xf32>
    %1 = math.cos %0 : vector<8x128xf32>
    %2 = arith.truncf %1 : vector<8x128xf32> to vector<8x128xbf16>
    %3 = math.sin %0 : vector<8x128xf32>
    %4 = arith.truncf %3 : vector<8x128xf32> to vector<8x128xbf16>
    %c0_1 = arith.constant 0 : index
    %c0_2 = arith.constant 0 : index
    %5 = vector.load %arg3[%c0_1, %c0_2] : memref<256x128xbf16, #tpu.memory_space<vmem>>, vector<128x128xbf16>
    %c128 = arith.constant 128 : index
    %c0_3 = arith.constant 0 : index
    %6 = vector.load %arg3[%c128, %c0_3] : memref<256x128xbf16, #tpu.memory_space<vmem>>, vector<128x128xbf16>
    %cst = arith.constant dense<0.000000e+00> : vector<8x128xf32>
    %7 = tpu.matmul %2, %5, %cst {dimension_numbers = #tpu.dot_dimension_numbers<[1], [0], [0], [1], [0, 0, 1, 1], [], []>} : vector<8x128xbf16>, vector<128x128xbf16>, vector<8x128xf32> -> vector<8x128xf32>
    %cst_4 = arith.constant dense<0.000000e+00> : vector<8x128xf32>
    %8 = tpu.matmul %4, %6, %cst_4 {dimension_numbers = #tpu.dot_dimension_numbers<[1], [0], [0], [1], [0, 0, 1, 1], [], []>} : vector<8x128xbf16>, vector<128x128xbf16>, vector<8x128xf32> -> vector<8x128xf32>
    %9 = arith.addf %7, %8 : vector<8x128xf32>
    %c0_5 = arith.constant 0 : index
    %c0_6 = arith.constant 0 : index
    %10 = vector.load %arg4[%c0_5, %c0_6] : memref<1x128xf32, #tpu.memory_space<vmem>>, vector<1x128xf32>
    %11 = vector.broadcast %10 : vector<1x128xf32> to vector<8x128xf32>
    %12 = arith.addf %9, %11 : vector<8x128xf32>
    %cst_7 = arith.constant 0.000000e+00 : f32
    %13 = vector.broadcast %cst_7 : f32 to vector<8x128xf32>
    %14 = arith.subf %13, %12 : vector<8x128xf32>
    %15 = math.exp %14 : vector<8x128xf32>
    %cst_8 = arith.constant 1.000000e+00 : f32
    %16 = vector.broadcast %cst_8 : f32 to vector<8x128xf32>
    %17 = arith.addf %16, %15 : vector<8x128xf32>
    %18 = tpu.reciprocal %17 {approx = true} : vector<8x128xf32> -> vector<8x128xf32>
    %19 = arith.mulf %12, %18 : vector<8x128xf32>
    %20 = arith.truncf %19 : vector<8x128xf32> to vector<8x128xbf16>
    %c0_9 = arith.constant 0 : index
    %c0_10 = arith.constant 0 : index
    %21 = vector.load %arg5[%c0_9, %c0_10] : memref<128x128xbf16, #tpu.memory_space<vmem>>, vector<128x128xbf16>
    %cst_11 = arith.constant dense<0.000000e+00> : vector<8x128xf32>
    %22 = tpu.matmul %20, %21, %cst_11 {dimension_numbers = #tpu.dot_dimension_numbers<[1], [0], [0], [1], [0, 0, 1, 1], [], []>} : vector<8x128xbf16>, vector<128x128xbf16>, vector<8x128xf32> -> vector<8x128xf32>
    %c0_12 = arith.constant 0 : index
    %c0_13 = arith.constant 0 : index
    %23 = vector.load %arg6[%c0_12, %c0_13] : memref<1x128xf32, #tpu.memory_space<vmem>>, vector<1x128xf32>
    %24 = vector.broadcast %23 : vector<1x128xf32> to vector<8x128xf32>
    %25 = arith.addf %22, %24 : vector<8x128xf32>
    %c0_14 = arith.constant 0 : index
    %c0_15 = arith.constant 0 : index
    %26 = vector.load %arg7[%c0_14, %c0_15] : memref<8x128xf32, #tpu.memory_space<vmem>>, vector<8x128xf32>
    tpu.vector_store %arg7[%c0_14, %c0_15], %25 {strides = array<i32>} : memref<8x128xf32, #tpu.memory_space<vmem>>, vector<8x128xf32>,
    return
  }
  func.func @transform_0(%arg0: i32, %arg1: i32) -> (i32, i32) {
    %c0_i32 = arith.constant 0 : i32
    %c0_i32_0 = arith.constant 0 : i32
    return %arg1, %c0_i32 : i32, i32
  }
  func.func @transform_1(%arg0: i32, %arg1: i32) -> (i32, i32) {
    %c0_i32 = arith.constant 0 : i32
    %c0_i32_0 = arith.constant 0 : i32
    %c0_i32_1 = arith.constant 0 : i32
    return %c0_i32, %c0_i32_0 : i32, i32
  }
  func.func @transform_2(%arg0: i32, %arg1: i32) -> (i32, i32) {
    %c0_i32 = arith.constant 0 : i32
    %c0_i32_0 = arith.constant 0 : i32
    %c0_i32_1 = arith.constant 0 : i32
    return %c0_i32, %c0_i32_0 : i32, i32
  }
  func.func @transform_3(%arg0: i32, %arg1: i32) -> (i32, i32) {
    %c0_i32 = arith.constant 0 : i32
    %c0_i32_0 = arith.constant 0 : i32
    return %c0_i32, %arg0 : i32, i32
  }
  func.func @transform_4(%arg0: i32, %arg1: i32) -> (i32, i32) {
    %c0_i32 = arith.constant 0 : i32
    %c0_i32_0 = arith.constant 0 : i32
    return %c0_i32, %arg0 : i32, i32
  }
  func.func @transform_5(%arg0: i32, %arg1: i32) -> (i32, i32) {
    %c0_i32 = arith.constant 0 : i32
    return %arg1, %arg0 : i32, i32
  }
}

</mosaic_0001>

<llo_original>
// kernel: tpu_custom_call.1
$region0: #{tpu_custom_call.1}
  #allocation0 [shape = 'u32[]', space=smem, size = 0x4, offset = 0x4, fixed_abs, tag = 'smem constant byte address 0x4 - core index']
  #allocation1 [shape = 'u32[144,128]{1,0:T(1,128)}', space=vmem, size = 0x12000, scoped, tag = 'internal scratch']
  %s0 = inlined_call_operand.hbm [shape: f32[8,128], index: 0, kind: input, shape index: {}]
  %s1 = inlined_call_operand.hbm [shape: bf16[256,128], index: 1, kind: input, shape index: {}]
  %s2 = inlined_call_operand.vmem [shape: f32[1,128], index: 2, kind: input, shape index: {}]
  %s3 = inlined_call_operand.hbm [shape: bf16[128,128], index: 3, kind: input, shape index: {}]
  %s4 = inlined_call_operand.vmem [shape: f32[1,128], index: 4, kind: input, shape index: {}]
  %s5 = inlined_call_operand.hbm [shape: f32[8,128], index: 5, kind: output, shape index: {}]
  %s6 = sld [smem:[#allocation0]]
  $region42: #{tpu_custom_call.1} parent=0
    _
  %s8 = ssub.s32 1, %s6
  %s9 = scalar_select 0, %s8, %s6
  $region1: #{tpu_custom_call.1} parent=0
    #allocation2 [shape = 'u8[4096]{0}', space=vmem, size = 0x1000, scoped, tag = 'input window, operand 0, single buffered']
    #allocation3 [shape = 's32[1]{0}', space=sflag, size = 0x4, scoped, tag = 'scoped memory for tpu_custom_call.1']
    #allocation4 [shape = 's32[1]{0}', space=sflag, size = 0x4, scoped, tag = 'scoped memory for tpu_custom_call.1']
    #allocation5 [shape = 'u8[65536]{0}', space=vmem, size = 0x10000, scoped, tag = 'input window, operand 1, single buffered']
    #allocation6 [shape = 's32[1]{0}', space=sflag, size = 0x4, scoped, tag = 'scoped memory for tpu_custom_call.1']
    #allocation7 [shape = 'u8[32768]{0}', space=vmem, size = 0x8000, scoped, tag = 'input window, operand 3, single buffered']
    #allocation8 [shape = 'u8[4096]{0}', space=vmem, size = 0x1000, scoped, tag = 'output window, operand 0, single buffered']
    %10 = vsyncpa [#allocation3], 0
    %11 = vsyncpa [#allocation6], 0
    %12 = vsyncpa [#allocation4], 0
    // Predicated region
    $region2: #{tpu_custom_call.1} parent=1 // pred_check
      _
    $region3: #{tpu_custom_call.1} parent=1 // pred_check_branch
      %14 = sbr.rel (0) target = $region5
    $region4: #{tpu_custom_call.1} parent=1 // pred_region
      %s16 = ssub.s32 128, 128
      %17 = vsyncadd [#allocation3], %s16
      %s19 = sshll.u32 [#allocation2], 4
      %s20 = int_to_ptr.vmem [resolvable:$true] %s19
      %22 = dma.hbm_to_vmem [thread:$0]  %s0, 128, %s20, [#allocation3]
    $region5: #{tpu_custom_call.1} parent=1 // pred_fallthru
      _
    // Predicated region
    $region6: #{tpu_custom_call.1} parent=1 // pred_check
      _
    $region7: #{tpu_custom_call.1} parent=1 // pred_check_branch
      %24 = sbr.rel (0) target = $region9
    $region8: #{tpu_custom_call.1} parent=1 // pred_region
      %s26 = ssub.s32 2048, 2048
      %27 = vsyncadd [#allocation6], %s26
      %s28 = sshll.u32 [#allocation5], 4
      %s29 = int_to_ptr.vmem [resolvable:$true] %s28
      %34 = dma.hbm_to_vmem [thread:$0]  %s1, 2048, %s29, [#allocation6], 64, 64, 4
    $region9: #{tpu_custom_call.1} parent=1 // pred_fallthru
      _
    // Predicated region
    $region10: #{tpu_custom_call.1} parent=1 // pred_check
      _
    $region11: #{tpu_custom_call.1} parent=1 // pred_check_branch
      %36 = sbr.rel (0) target = $region13
    $region12: #{tpu_custom_call.1} parent=1 // pred_region
      _
    $region13: #{tpu_custom_call.1} parent=1 // pred_fallthru
      _
    // Predicated region
    $region14: #{tpu_custom_call.1} parent=1 // pred_check
      _
    $region15: #{tpu_custom_call.1} parent=1 // pred_check_branch
      %38 = sbr.rel (0) target = $region17
    $region16: #{tpu_custom_call.1} parent=1 // pred_region
      %s40 = ssub.s32 1024, 1024
      %41 = vsyncadd [#allocation6], %s40
      %s42 = sshll.u32 [#allocation7], 4
      %s43 = int_to_ptr.vmem [resolvable:$true] %s42
      %48 = dma.hbm_to_vmem [thread:$0]  %s3, 1024, %s43, [#allocation6], 64, 64, 4
    $region17: #{tpu_custom_call.1} parent=1 // pred_fallthru
      _
    // Predicated region
    $region18: #{tpu_custom_call.1} parent=1 // pred_check
      _
    $region19: #{tpu_custom_call.1} parent=1 // pred_check_branch
      %50 = sbr.rel (0) target = $region21
    $region20: #{tpu_custom_call.1} parent=1 // pred_region
      _
    $region21: #{tpu_custom_call.1} parent=1 // pred_fallthru
      _
    // Predicated region
    $region22: #{tpu_custom_call.1} parent=1 // pred_check
      _
    $region23: #{tpu_custom_call.1} parent=1 // pred_check_branch
      %52 = sbr.rel (0) target = $region25
    $region24: #{tpu_custom_call.1} parent=1 // pred_region
      %53 = dma.done [#allocation3], 128
    $region25: #{tpu_custom_call.1} parent=1 // pred_fallthru
      _
    // Predicated region
    $region26: #{tpu_custom_call.1} parent=1 // pred_check
      _
    $region27: #{tpu_custom_call.1} parent=1 // pred_check_branch
      %55 = sbr.rel (0) target = $region29
    $region28: #{tpu_custom_call.1} parent=1 // pred_region
      %56 = dma.done [#allocation6], 2048
    $region29: #{tpu_custom_call.1} parent=1 // pred_fallthru
      _
    // Predicated region
    $region30: #{tpu_custom_call.1} parent=1 // pred_check
      _
    $region31: #{tpu_custom_call.1} parent=1 // pred_check_branch
      %58 = sbr.rel (0) target = $region33
    $region32: #{tpu_custom_call.1} parent=1 // pred_region
      %59 = dma.done [#allocation6], 1024
    $region33: #{tpu_custom_call.1} parent=1 // pred_fallthru
      _
    %v61 = vld [vmem:[#allocation2] sm:$0xff]
    %v62 = vand.u32 2147483647, %v61
    %vm63 = vcmp.le.f32.partialorder %v62, 0.7853982
    %vm64 = vcmp.lt.s32.totalorder %v61, 0
    %v65 = vand.u32 %v61, 2139095040
    %v66 = vshrl.u32 %v65, 23
    %v67 = vsub.s32 %v66, 127
    %v68 = vand.u32 2147483647, %v61
    %v69 = vand.u32 %v68, 8388607
    %v70 = vor.u32 %v69, 8388608
    %v71 = vsub.s32 0, %v70
    %v72 = vadd.s32 %v67, 1
    %vm73 = vcmp.gt.s32.totalorder %v72, 0
    %v74 = vsel %vm73, %v72, 0
    %v75 = vshrl.u32 %v74, 5
    %v76 = vand.u32 %v74, 31
    %v77 = vsub.s32 32, %v76
    %v78 = vshrl.u32 683565275, %v77
    %v79 = vshll.u32 683565275, %v76
    %v80 = vshrl.u32 2475754826, %v77
    %v81 = vor.u32 %v79, %v80
    %v82 = vshll.u32 2475754826, %v76
    %v83 = vshrl.u32 2131351028, %v77
    %v84 = vor.u32 %v82, %v83
    %v85 = vshll.u32 2131351028, %v76
    %v86 = vshrl.u32 2102212464, %v77
    %v87 = vor.u32 %v85, %v86
    %v88 = vshll.u32 2102212464, %v76
    %v89 = vshrl.u32 920167782, %v77
    %v90 = vor.u32 %v88, %v89
    %v91 = vshll.u32 920167782, %v76
    %v92 = vshrl.u32 1326507024, %v77
    %v93 = vor.u32 %v91, %v92
    %vm94 = vcmp.lt.s32.totalorder %v75, 1
    %vm95 = vcmp.lt.s32.totalorder %v75, 2
    %vm96 = vcmp.lt.s32.totalorder %v75, 3
    %vm97 = vcmp.lt.s32.totalorder %v75, 4
    %v98 = vsel %vm94, %v78, %v81
    %v99 = vsel %vm97, %v87, 2102212464
    %v100 = vsel %vm96, %v84, %v99
    %v101 = vsel %vm95, %v98, %v100
    %v102 = vsel %vm94, %v81, %v84
    %v103 = vsel %vm97, %v90, 920167782
    %v104 = vsel %vm96, %v87, %v103
    %v105 = vsel %vm95, %v102, %v104
    %v106 = vsel %vm94, %v84, %v87
    %v107 = vsel %vm97, %v93, 1326507024
    %v108 = vsel %vm96, %v90, %v107
    %v109 = vsel %vm95, %v106, %v108
    %v110 = vshll.u32 %v70, 8
    %v111 = vmul.u32.u64.compose %v110, %v109
    %v112 = vextract.low.u32 %v111
    %v113 = vextract.high.u32 %v111
    %v114 = vmul.u32.u64.compose %v110, %v105
    %v115 = vextract.low.u32 %v114
    %v116 = vextract.high.u32 %v114
    %v117 = vmul.u32 %v110, %v101
    %v118 = vadd.s32 %v113, %v115
    %vm119 = vc.u32 %v113, %v115
    %v120 = vadd.s32 %v116, 1
    %v121 = vsel %vm119, %v120, %v116
    %v122 = vadd.s32 %v117, %v121
    %v123 = vadd.s32 %v122, 536870912
    %v124 = vshrl.u32 %v123, 30
    %v125 = vshll.u32 %v124, 30
    %v126 = vsub.s32 %v122, %v125
    %vm127 = vcmp.lt.s32.totalorder %v126, 0
    %v128 = vsub.s32 0, %v126
    %v129 = vsel %vm127, %v128, %v126
    %v130 = vclz %v129
    %v131 = vsub.s32 %v130, 2
    %vm132 = vcmp.gt.s32.totalorder 0, %v131
    %v133 = vsel %vm132, 0, %v131
    %v134 = vsub.s32 32, %v133
    %v135 = vshll.u32 %v126, %v133
    %v136 = vshrl.u32 %v118, %v134
    %v137 = vor.u32 %v135, %v136
    %v138 = vsub.s32 4294967266, %v133
    %v139 = vadd.s32 %v138, 127
    %v140 = vshll.u32 %v139, 23
    %v141 = vor.u32 4788187, %v140
    %v142 = vand.u32 2147483647, %v141
    %v144 = vcvt.s32.f32 %v137
    %v145 = vmul.f32 %v144, %v142
    %v146 = vxor.u32 %v145, 2147483648
    %v147 = vsel %vm64, %v146, %v145
    %v148 = vsub.s32 4, %v124
    %v149 = vsel %vm64, %v148, %v124
    %v150 = vsel %vm63, %v61, %v147
    %v151 = vsel %vm63, 0, %v149
    %v152 = vcosq.f32.pop %v150
    %v153 = vsinq.f32.pop %v150
    %vm154 = vweird.f32 %v61
    %v155 = vand.u32 %v151, 3
    %vm156 = vcmp.lt.s32.totalorder %v155, 2
    %vm157 = vcmp.eq.s32.totalorder %v155, 0
    %v158 = vxor.u32 %v153, 2147483648
    %v159 = vsel %vm157, %v152, %v158
    %vm160 = vcmp.eq.s32.totalorder %v155, 2
    %v161 = vxor.u32 %v152, 2147483648
    %v162 = vsel %vm160, %v161, %v153
    %v163 = vsel %vm156, %v159, %v162
    %v164 = vsel %vm154, nan, %v163
    %v165 = vpack.c.bf16 %v164, %v164
    %v166 = vand.u32 2147483647, %v61
    %vm167 = vcmp.le.f32.partialorder %v166, 0.7853982
    %vm168 = vcmp.lt.s32.totalorder %v61, 0
    %v169 = vand.u32 %v61, 2139095040
    %v170 = vshrl.u32 %v169, 23
    %v171 = vsub.s32 %v170, 127
    %v172 = vand.u32 2147483647, %v61
    %v173 = vand.u32 %v172, 8388607
    %v174 = vor.u32 %v173, 8388608
    %v175 = vsub.s32 0, %v174
    %v176 = vadd.s32 %v171, 1
    %vm177 = vcmp.gt.s32.totalorder %v176, 0
    %v178 = vsel %vm177, %v176, 0
    %v179 = vshrl.u32 %v178, 5
    %v180 = vand.u32 %v178, 31
    %v181 = vsub.s32 32, %v180
    %v182 = vshrl.u32 683565275, %v181
    %v183 = vshll.u32 683565275, %v180
    %v184 = vshrl.u32 2475754826, %v181
    %v185 = vor.u32 %v183, %v184
    %v186 = vshll.u32 2475754826, %v180
    %v187 = vshrl.u32 2131351028, %v181
    %v188 = vor.u32 %v186, %v187
    %v189 = vshll.u32 2131351028, %v180
    %v190 = vshrl.u32 2102212464, %v181
    %v191 = vor.u32 %v189, %v190
    %v192 = vshll.u32 2102212464, %v180
    %v193 = vshrl.u32 920167782, %v181
    %v194 = vor.u32 %v192, %v193
    %v195 = vshll.u32 920167782, %v180
    %v196 = vshrl.u32 1326507024, %v181
    %v197 = vor.u32 %v195, %v196
    %vm198 = vcmp.lt.s32.totalorder %v179, 1
    %vm199 = vcmp.lt.s32.totalorder %v179, 2
    %vm200 = vcmp.lt.s32.totalorder %v179, 3
    %vm201 = vcmp.lt.s32.totalorder %v179, 4
    %v202 = vsel %vm198, %v182, %v185
    %v203 = vsel %vm201, %v191, 2102212464
    %v204 = vsel %vm200, %v188, %v203
    %v205 = vsel %vm199, %v202, %v204
    %v206 = vsel %vm198, %v185, %v188
    %v207 = vsel %vm201, %v194, 920167782
    %v208 = vsel %vm200, %v191, %v207
    %v209 = vsel %vm199, %v206, %v208
    %v210 = vsel %vm198, %v188, %v191
    %v211 = vsel %vm201, %v197, 1326507024
    %v212 = vsel %vm200, %v194, %v211
    %v213 = vsel %vm199, %v210, %v212
    %v214 = vshll.u32 %v174, 8
    %v215 = vmul.u32.u64.compose %v214, %v213
    %v216 = vextract.low.u32 %v215
    %v217 = vextract.high.u32 %v215
    %v218 = vmul.u32.u64.compose %v214, %v209
    %v219 = vextract.low.u32 %v218
    %v220 = vextract.high.u32 %v218
    %v221 = vmul.u32 %v214, %v205
    %v222 = vadd.s32 %v217, %v219
    %vm223 = vc.u32 %v217, %v219
    %v224 = vadd.s32 %v220, 1
    %v225 = vsel %vm223, %v224, %v220
    %v226 = vadd.s32 %v221, %v225
    %v227 = vadd.s32 %v226, 536870912
    %v228 = vshrl.u32 %v227, 30
    %v229 = vshll.u32 %v228, 30
    %v230 = vsub.s32 %v226, %v229
    %vm231 = vcmp.lt.s32.totalorder %v230, 0
    %v232 = vsub.s32 0, %v230
    %v233 = vsel %vm231, %v232, %v230
    %v234 = vclz %v233
    %v235 = vsub.s32 %v234, 2
    %vm236 = vcmp.gt.s32.totalorder 0, %v235
    %v237 = vsel %vm236, 0, %v235
    %v238 = vsub.s32 32, %v237
    %v239 = vshll.u32 %v230, %v237
    %v240 = vshrl.u32 %v222, %v238
    %v241 = vor.u32 %v239, %v240
    %v242 = vsub.s32 4294967266, %v237
    %v243 = vadd.s32 %v242, 127
    %v244 = vshll.u32 %v243, 23
    %v245 = vor.u32 4788187, %v244
    %v246 = vand.u32 2147483647, %v245
    %v248 = vcvt.s32.f32 %v241
    %v249 = vmul.f32 %v248, %v246
    %v250 = vxor.u32 %v249, 2147483648
    %v251 = vsel %vm168, %v250, %v249
    %v252 = vsub.s32 4, %v228
    %v253 = vsel %vm168, %v252, %v228
    %v254 = vsel %vm167, %v61, %v251
    %v255 = vsel %vm167, 0, %v253
    %v256 = vcosq.f32.pop %v254
    %v257 = vsinq.f32.pop %v254
    %vm258 = vweird.f32 %v61
    %v259 = vadd.s32 %v255, 3
    %v260 = vand.u32 %v259, 3
    %vm261 = vcmp.lt.s32.totalorder %v260, 2
    %vm262 = vcmp.eq.s32.totalorder %v260, 0
    %v263 = vxor.u32 %v257, 2147483648
    %v264 = vsel %vm262, %v256, %v263
    %vm265 = vcmp.eq.s32.totalorder %v260, 2
    %v266 = vxor.u32 %v256, 2147483648
    %v267 = vsel %vm265, %v266, %v257
    %v268 = vsel %vm261, %v264, %v267
    %v269 = vsel %vm258, nan, %v268
    %v270 = vpack.c.bf16 %v269, %v269
    %v271 = vld [vmem:[#allocation5] sm:$0xf]
    %v272 = vld [vmem:[#allocation5 + $0x4] sm:$0xf]
    %v273 = vld [vmem:[#allocation5 + $0x8] sm:$0xf]
    %v274 = vld [vmem:[#allocation5 + $0xc] sm:$0xf]
    %v275 = vld [vmem:[#allocation5 + $0x10] sm:$0xf]
    %v276 = vld [vmem:[#allocation5 + $0x14] sm:$0xf]
    %v277 = vld [vmem:[#allocation5 + $0x18] sm:$0xf]
    %v278 = vld [vmem:[#allocation5 + $0x1c] sm:$0xf]
    %v279 = vld [vmem:[#allocation5 + $0x20] sm:$0xf]
    %v280 = vld [vmem:[#allocation5 + $0x24] sm:$0xf]
    %v281 = vld [vmem:[#allocation5 + $0x28] sm:$0xf]
    %v282 = vld [vmem:[#allocation5 + $0x2c] sm:$0xf]
    %v283 = vld [vmem:[#allocation5 + $0x30] sm:$0xf]
    %v284 = vld [vmem:[#allocation5 + $0x34] sm:$0xf]
    %v285 = vld [vmem:[#allocation5 + $0x38] sm:$0xf]
    %v286 = vld [vmem:[#allocation5 + $0x3c] sm:$0xf]
    %v287 = vld [vmem:[#allocation5 + $0x40] sm:$0xf]
    %v288 = vld [vmem:[#allocation5 + $0x44] sm:$0xf]
    %v289 = vld [vmem:[#allocation5 + $0x48] sm:$0xf]
    %v290 = vld [vmem:[#allocation5 + $0x4c] sm:$0xf]
    %v291 = vld [vmem:[#allocation5 + $0x50] sm:$0xf]
    %v292 = vld [vmem:[#allocation5 + $0x54] sm:$0xf]
    %v293 = vld [vmem:[#allocation5 + $0x58] sm:$0xf]
    %v294 = vld [vmem:[#allocation5 + $0x5c] sm:$0xf]
    %v295 = vld [vmem:[#allocation5 + $0x60] sm:$0xf]
    %v296 = vld [vmem:[#allocation5 + $0x64] sm:$0xf]
    %v297 = vld [vmem:[#allocation5 + $0x68] sm:$0xf]
    %v298 = vld [vmem:[#allocation5 + $0x6c] sm:$0xf]
    %v299 = vld [vmem:[#allocation5 + $0x70] sm:$0xf]
    %v300 = vld [vmem:[#allocation5 + $0x74] sm:$0xf]
    %v301 = vld [vmem:[#allocation5 + $0x78] sm:$0xf]
    %v302 = vld [vmem:[#allocation5 + $0x7c] sm:$0xf]
    %v319 = vunpack.c.l.b16 %v287
    %v320 = vunpack.c.l.b16 %v288
    %v321 = vunpack.c.l.b16 %v289
    %v322 = vunpack.c.l.b16 %v290
    %v323 = vunpack.c.l.b16 %v291
    %v324 = vunpack.c.l.b16 %v292
    %v325 = vunpack.c.l.b16 %v293
    %v326 = vunpack.c.l.b16 %v294
    %v327 = vunpack.c.l.b16 %v295
    %v328 = vunpack.c.l.b16 %v296
    %v329 = vunpack.c.l.b16 %v297
    %v330 = vunpack.c.l.b16 %v298
    %v331 = vunpack.c.l.b16 %v299
    %v332 = vunpack.c.l.b16 %v300
    %v333 = vunpack.c.l.b16 %v301
    %v334 = vunpack.c.l.b16 %v302
    %v335 = vpack.c.b16 %v320, %v319
    %v336 = vpack.c.b16 %v322, %v321
    %v337 = vpack.c.b16 %v324, %v323
    %v338 = vpack.c.b16 %v326, %v325
    %v339 = vpack.c.b16 %v328, %v327
    %v340 = vpack.c.b16 %v330, %v329
    %v341 = vpack.c.b16 %v332, %v331
    %v342 = vpack.c.b16 %v334, %v333
    %351 = vmatprep.subr.bf16.mxu0 0
    %352 = vmatpush1.bf16.msra.mxu0 %v335
    %353 = vmatprep.subr.bf16.mxu0 0
    %354 = vmatpush1.bf16.msra.mxu0 %v336
    %355 = vmatprep.subr.bf16.mxu0 0
    %356 = vmatpush1.bf16.msra.mxu0 %v337
    %357 = vmatprep.subr.bf16.mxu0 0
    %358 = vmatpush1.bf16.msra.mxu0 %v338
    %359 = vmatprep.subr.bf16.mxu0 0
    %360 = vmatpush1.bf16.msra.mxu0 %v339
    %361 = vmatprep.subr.bf16.mxu0 0
    %362 = vmatpush1.bf16.msra.mxu0 %v340
    %363 = vmatprep.subr.bf16.mxu0 0
    %364 = vmatpush1.bf16.msra.mxu0 %v341
    %365 = vmatprep.subr.bf16.mxu0 0
    %366 = vmatpush1.bf16.msra.mxu0 %v342
    %367 = vmatprep.subr.bf16.mxu0 0
    %368 = vmatpush1.bf16.msra.mxu0 0
    %369 = vmatprep.subr.bf16.mxu0 0
    %370 = vmatpush1.bf16.msra.mxu0 0
    %371 = vmatprep.subr.bf16.mxu0 0
    %372 = vmatpush1.bf16.msra.mxu0 0
    %373 = vmatprep.subr.bf16.mxu0 0
    %374 = vmatpush1.bf16.msra.mxu0 0
    %375 = vmatprep.subr.bf16.mxu0 0
    %376 = vmatpush1.bf16.msra.mxu0 0
    %377 = vmatprep.subr.bf16.mxu0 0
    %378 = vmatpush1.bf16.msra.mxu0 0
    %379 = vmatprep.subr.bf16.mxu0 0
    %380 = vmatpush1.bf16.msra.mxu0 0
    %381 = vmatprep.subr.bf16.mxu0 0
    %382 = vmatpush1.bf16.msra.mxu0 0
    %383 = vmatprep.mubr.bf16.mxu0 0
    %384 = vmatmul.mubr.bf16.gmra.mrb[0].mxu0 %v270
    %v385 = vpop.f32.mrb[0].mxu0
    %v386 = vadd.f32 0.0, %v385
    %v387 = vpop.f32.mrb[0].mxu0
    %v388 = vpop.f32.mrb[0].mxu0
    %v389 = vpop.f32.mrb[0].mxu0
    %390 = vdwg.mxu0
    %v407 = vunpack.c.l.b16 %v271
    %v408 = vunpack.c.l.b16 %v272
    %v409 = vunpack.c.l.b16 %v273
    %v410 = vunpack.c.l.b16 %v274
    %v411 = vunpack.c.l.b16 %v275
    %v412 = vunpack.c.l.b16 %v276
    %v413 = vunpack.c.l.b16 %v277
    %v414 = vunpack.c.l.b16 %v278
    %v415 = vunpack.c.l.b16 %v279
    %v416 = vunpack.c.l.b16 %v280
    %v417 = vunpack.c.l.b16 %v281
    %v418 = vunpack.c.l.b16 %v282
    %v419 = vunpack.c.l.b16 %v283
    %v420 = vunpack.c.l.b16 %v284
    %v421 = vunpack.c.l.b16 %v285
    %v422 = vunpack.c.l.b16 %v286
    %v423 = vpack.c.b16 %v408, %v407
    %v424 = vpack.c.b16 %v410, %v409
    %v425 = vpack.c.b16 %v412, %v411
    %v426 = vpack.c.b16 %v414, %v413
    %v427 = vpack.c.b16 %v416, %v415
    %v428 = vpack.c.b16 %v418, %v417
    %v429 = vpack.c.b16 %v420, %v419
    %v430 = vpack.c.b16 %v422, %v421
    %439 = vmatprep.subr.bf16.mxu0 0
    %440 = vmatpush1.bf16.msra.mxu0 %v423
    %441 = vmatprep.subr.bf16.mxu0 0
    %442 = vmatpush1.bf16.msra.mxu0 %v424
    %443 = vmatprep.subr.bf16.mxu0 0
    %444 = vmatpush1.bf16.msra.mxu0 %v425
    %445 = vmatprep.subr.bf16.mxu0 0
    %446 = vmatpush1.bf16.msra.mxu0 %v426
    %447 = vmatprep.subr.bf16.mxu0 0
    %448 = vmatpush1.bf16.msra.mxu0 %v427
    %449 = vmatprep.subr.bf16.mxu0 0
    %450 = vmatpush1.bf16.msra.mxu0 %v428
    %451 = vmatprep.subr.bf16.mxu0 0
    %452 = vmatpush1.bf16.msra.mxu0 %v429
    %453 = vmatprep.subr.bf16.mxu0 0
    %454 = vmatpush1.bf16.msra.mxu0 %v430
    %455 = vmatprep.subr.bf16.mxu0 0
    %456 = vmatpush1.bf16.msra.mxu0 0
    %457 = vmatprep.subr.bf16.mxu0 0
    %458 = vmatpush1.bf16.msra.mxu0 0
    %459 = vmatprep.subr.bf16.mxu0 0
    %460 = vmatpush1.bf16.msra.mxu0 0
    %461 = vmatprep.subr.bf16.mxu0 0
    %462 = vmatpush1.bf16.msra.mxu0 0
    %463 = vmatprep.subr.bf16.mxu0 0
    %464 = vmatpush1.bf16.msra.mxu0 0
    %465 = vmatprep.subr.bf16.mxu0 0
    %466 = vmatpush1.bf16.msra.mxu0 0
    %467 = vmatprep.subr.bf16.mxu0 0
    %468 = vmatpush1.bf16.msra.mxu0 0
    %469 = vmatprep.subr.bf16.mxu0 0
    %470 = vmatpush1.bf16.msra.mxu0 0
    %471 = vmatprep.mubr.bf16.mxu0 0
    %472 = vmatmul.mubr.bf16.gmra.mrb[0].mxu0 %v165
    %v473 = vpop.f32.mrb[0].mxu0
    %v474 = vadd.f32 %v386, %v473
    %v475 = vpop.f32.mrb[0].mxu0
    %v476 = vpop.f32.mrb[0].mxu0
    %v477 = vpop.f32.mrb[0].mxu0
    %478 = vdwg.mxu0
    %v479 = vld [vmem:[%s2] sm:$0x1]
    %v481 = vlaneseq
    %v482 = vshrl.u32 %v481, 7
    %v483 = vsub.s32 0, %v482
    %v484 = vrot.slane %v479, %v483
    %v486 = vadd.f32 %v474, %v484
    %v487 = vsub.f32 0.0, %v486
    %v488 = vmul.f32 %v487, 1.442695
    %v489 = vpow.pop %v488
    %v490 = vadd.f32 %v489, 1.0
    %v491 = vrcp.pop %v490
    %v492 = vmul.f32 %v486, %v491
    %v493 = vpack.c.bf16 %v492, %v492
    %v494 = vld [vmem:[#allocation7] sm:$0xf]
    %v495 = vld [vmem:[#allocation7 + $0x4] sm:$0xf]
    %v496 = vld [vmem:[#allocation7 + $0x8] sm:$0xf]
    %v497 = vld [vmem:[#allocation7 + $0xc] sm:$0xf]
    %v498 = vld [vmem:[#allocation7 + $0x10] sm:$0xf]
    %v499 = vld [vmem:[#allocation7 + $0x14] sm:$0xf]
    %v500 = vld [vmem:[#allocation7 + $0x18] sm:$0xf]
    %v501 = vld [vmem:[#allocation7 + $0x1c] sm:$0xf]
    %v502 = vld [vmem:[#allocation7 + $0x20] sm:$0xf]
    %v503 = vld [vmem:[#allocation7 + $0x24] sm:$0xf]
    %v504 = vld [vmem:[#allocation7 + $0x28] sm:$0xf]
    %v505 = vld [vmem:[#allocation7 + $0x2c] sm:$0xf]
    %v506 = vld [vmem:[#allocation7 + $0x30] sm:$0xf]
    %v507 = vld [vmem:[#allocation7 + $0x34] sm:$0xf]
    %v508 = vld [vmem:[#allocation7 + $0x38] sm:$0xf]
    %v509 = vld [vmem:[#allocation7 + $0x3c] sm:$0xf]
    %v510 = vld [vmem:[%s4] sm:$0x1]
    %v512 = vlaneseq
    %v513 = vshrl.u32 %v512, 7
    %v514 = vsub.s32 0, %v513
    %v515 = vrot.slane %v510, %v514
    %v533 = vunpack.c.l.b16 %v494
    %v534 = vunpack.c.l.b16 %v495
    %v535 = vunpack.c.l.b16 %v496
    %v536 = vunpack.c.l.b16 %v497
    %v537 = vunpack.c.l.b16 %v498
    %v538 = vunpack.c.l.b16 %v499
    %v539 = vunpack.c.l.b16 %v500
    %v540 = vunpack.c.l.b16 %v501
    %v541 = vunpack.c.l.b16 %v502
    %v542 = vunpack.c.l.b16 %v503
    %v543 = vunpack.c.l.b16 %v504
    %v544 = vunpack.c.l.b16 %v505
    %v545 = vunpack.c.l.b16 %v506
    %v546 = vunpack.c.l.b16 %v507
    %v547 = vunpack.c.l.b16 %v508
    %v548 = vunpack.c.l.b16 %v509
    %v549 = vpack.c.b16 %v534, %v533
    %v550 = vpack.c.b16 %v536, %v535
    %v551 = vpack.c.b16 %v538, %v537
    %v552 = vpack.c.b16 %v540, %v539
    %v553 = vpack.c.b16 %v542, %v541
    %v554 = vpack.c.b16 %v544, %v543
    %v555 = vpack.c.b16 %v546, %v545
    %v556 = vpack.c.b16 %v548, %v547
    %565 = vmatprep.subr.bf16.mxu0 0
    %566 = vmatpush1.bf16.msra.mxu0 %v549
    %567 = vmatprep.subr.bf16.mxu0 0
    %568 = vmatpush1.bf16.msra.mxu0 %v550
    %569 = vmatprep.subr.bf16.mxu0 0
    %570 = vmatpush1.bf16.msra.mxu0 %v551
    %571 = vmatprep.subr.bf16.mxu0 0
    %572 = vmatpush1.bf16.msra.mxu0 %v552
    %573 = vmatprep.subr.bf16.mxu0 0
    %574 = vmatpush1.bf16.msra.mxu0 %v553
    %575 = vmatprep.subr.bf16.mxu0 0
    %576 = vmatpush1.bf16.msra.mxu0 %v554
    %577 = vmatprep.subr.bf16.mxu0 0
    %578 = vmatpush1.bf16.msra.mxu0 %v555
    %579 = vmatprep.subr.bf16.mxu0 0
    %580 = vmatpush1.bf16.msra.mxu0 %v556
    %581 = vmatprep.subr.bf16.mxu0 0
    %582 = vmatpush1.bf16.msra.mxu0 0
    %583 = vmatprep.subr.bf16.mxu0 0
    %584 = vmatpush1.bf16.msra.mxu0 0
    %585 = vmatprep.subr.bf16.mxu0 0
    %586 = vmatpush1.bf16.msra.mxu0 0
    %587 = vmatprep.subr.bf16.mxu0 0
    %588 = vmatpush1.bf16.msra.mxu0 0
    %589 = vmatprep.subr.bf16.mxu0 0
    %590 = vmatpush1.bf16.msra.mxu0 0
    %591 = vmatprep.subr.bf16.mxu0 0
    %592 = vmatpush1.bf16.msra.mxu0 0
    %593 = vmatprep.subr.bf16.mxu0 0
    %594 = vmatpush1.bf16.msra.mxu0 0
    %595 = vmatprep.subr.bf16.mxu0 0
    %596 = vmatpush1.bf16.msra.mxu0 0
    %597 = vmatprep.mubr.bf16.mxu0 0
    %598 = vmatmul.mubr.bf16.gmra.mrb[0].mxu0 %v493
    %v599 = vpop.f32.mrb[0].mxu0
    %v600 = vadd.f32 %v515, %v599
    %v601 = vpop.f32.mrb[0].mxu0
    %v602 = vpop.f32.mrb[0].mxu0
    %v603 = vpop.f32.mrb[0].mxu0
    %604 = vdwg.mxu0
    %605 = vst [vmem:[#allocation8] sm:$0xff] %v600
    // Predicated region
    $region34: #{tpu_custom_call.1} parent=1 // pred_check
      _
    $region35: #{tpu_custom_call.1} parent=1 // pred_check_branch
      %607 = sbr.rel (0) target = $region37
    $region36: #{tpu_custom_call.1} parent=1 // pred_region
      %s609 = ssub.s32 128, 128
      %610 = vsyncadd [#allocation4], %s609
      %s612 = sshll.u32 [#allocation8], 4
      %s613 = int_to_ptr.vmem [resolvable:$true] %s612
      %615 = dma.vmem_to_hbm [thread:$0]  %s613, 128, %s5, [#allocation4]
    $region37: #{tpu_custom_call.1} parent=1 // pred_fallthru
      _
    // Predicated region
    $region38: #{tpu_custom_call.1} parent=1 // pred_check
      _
    $region39: #{tpu_custom_call.1} parent=1 // pred_check_branch
      %617 = sbr.rel (0) target = $region41
    $region40: #{tpu_custom_call.1} parent=1 // pred_region
      %618 = dma.done [#allocation4], 128
    $region41: #{tpu_custom_call.1} parent=1 // pred_fallthru
      _
    %619 = vsyncpa [#allocation3], 1
    %620 = vsyncpa [#allocation6], 1
    %621 = vsyncpa [#allocation4], 1

</llo_original>
